<compile_context>
chip_gen: v5e
topology: v5e:2x2
jax: 0.10.0
libtpu: 0.0.40
codegen_flags: <defaults>
</compile_context>

<pallas_src>
import jax
import jax.numpy as jnp
from jax.experimental import pallas as pl
from jax.experimental.pallas import tpu as pltpu


def _mlp_probe_kernel(x_ref, w1_ref, b1_ref, w2_ref, b2_ref,
                      w3_ref, b3_ref, w4_ref, b4_ref, o_ref):
    # Layer 1: single K=2H bf16 matmul (concat already folded), f32 accumulate.
    h = jnp.dot(x_ref[...], w1_ref[...],
                preferred_element_type=jnp.float32) + b1_ref[...]
    h = jnp.maximum(h, 0.0)

    # Layer 2
    h = jnp.dot(h.astype(jnp.bfloat16), w2_ref[...],
                preferred_element_type=jnp.float32) + b2_ref[...]
    h = jnp.maximum(h, 0.0)

    # Layer 3
    h = jnp.dot(h.astype(jnp.bfloat16), w3_ref[...],
                preferred_element_type=jnp.float32) + b3_ref[...]
    h = jnp.maximum(h, 0.0)

    # Layer 4 (out_dim == 1): skinny [TB,64]@[64,1] MXU dot replaced by a
    # VPU multiply + lane reduce (kept in f32).
    o_ref[...] = (jnp.sum(h * w4_ref[...], axis=-1, keepdims=True)
                  + b4_ref[...]).astype(o_ref.dtype)


def _round_up(x, m):
    return (x + m - 1) // m * m


def mlp_regression_probe(anchor_vec, cand_vec, params, *, batch_tile=512):
    """Fused forward pass. anchor_vec, cand_vec: [B, H] float32. Returns [B]."""
    B, H = anchor_vec.shape
    w1, b1, w2, b2, w3, b3, w4, b4 = params
    out_dim = w4.shape[1]
    assert out_dim == 1, "kernel implements the module's default out_dim=1"
    K = 2 * H

    # Fold the torch.cat into the wrapper: one lane-denser [B, 2H] input tile.
    x = jnp.concatenate([anchor_vec, cand_vec], axis=1)

    # Batch tile: multiple of 8 sublanes; pad B up to a multiple of it.
    # 512 rows keeps every live buffer well under v7x's 64 MiB VMEM while
    # reaching the large-tile regime on v5e/v6e too.
    TB = min(batch_tile, _round_up(B, 8))
    B_pad = _round_up(B, TB)
    if B_pad != B:
        x = jnp.pad(x, ((0, B_pad - B), (0, 0)))

    # bf16 operands for the MXU; f32 accumulation happens inside the kernel.
    x_bf = x.astype(jnp.bfloat16)
    w1_bf = w1.astype(jnp.bfloat16)
    w2_bf = w2.astype(jnp.bfloat16)
    w3_bf = w3.astype(jnp.bfloat16)
    b1_ = b1.reshape(1, -1).astype(jnp.float32)
    b2_ = b2.reshape(1, -1).astype(jnp.float32)
    b3_ = b3.reshape(1, -1).astype(jnp.float32)
    # Final layer stays f32; weight passed as a [1, 64] row for the reduce.
    w4_row = w4.reshape(1, -1).astype(jnp.float32)
    b4_ = b4.reshape(1, 1).astype(jnp.float32)

    grid = (B_pad // TB,)
    const = lambda i: (0, 0)  # weights/biases: same block every step -> DMA'd once

    flops = 2 * B_pad * (K * 256 + 256 * 128 + 128 * 64 + 64)
    weight_bytes = ((w1_bf.size + w2_bf.size + w3_bf.size) * 2
                    + (w4_row.size + b1_.size + b2_.size + b3_.size + b4_.size) * 4)
    bytes_accessed = B_pad * K * 2 + B_pad * out_dim * 4 + weight_bytes

    out = pl.pallas_call(
        _mlp_probe_kernel,
        out_shape=jax.ShapeDtypeStruct((B_pad, out_dim), jnp.float32),
        grid=grid,
        in_specs=[
            pl.BlockSpec((TB, K), lambda i: (i, 0)),      # x tile
            pl.BlockSpec((K, 256), const),                # w1
            pl.BlockSpec((1, 256), const),                # b1
            pl.BlockSpec((256, 128), const),              # w2
            pl.BlockSpec((1, 128), const),                # b2
            pl.BlockSpec((128, 64), const),               # w3
            pl.BlockSpec((1, 64), const),                 # b3
            pl.BlockSpec((1, 64), const),                 # w4 (row)
            pl.BlockSpec((1, 1), const),                  # b4
        ],
        out_specs=pl.BlockSpec((TB, out_dim), lambda i: (i, 0)),
        compiler_params=pltpu.CompilerParams(
            dimension_semantics=("parallel",)),
        cost_estimate=pl.CostEstimate(
            flops=flops, transcendentals=0, bytes_accessed=bytes_accessed),
    )(x_bf, w1_bf, b1_, w2_bf, b2_, w3_bf, b3_, w4_row, b4_)

    # Drop batch padding; torch does output.squeeze(dim=1).
    return out[:B, 0]


def init_params(hidden_dim, out_dim=1, seed=0):
    """Deterministic synthetic init matching torch.nn.Linear shapes.

    Weights are stored [in_features, out_features] (transpose of torch)."""
    key = jax.random.PRNGKey(seed)
    dims = [(hidden_dim * 2, 256), (256, 128), (128, 64), (64, out_dim)]
    params = []
    for (din, dout) in dims:
        key, kw, kb = jax.random.split(key, 3)
        bound = 1.0 / jnp.sqrt(din)  # same bound torch uses
        w = jax.random.uniform(kw, (din, dout), jnp.float32, -bound, bound)
        b = jax.random.uniform(kb, (dout,), jnp.float32, -bound, bound)
        params += [w, b]
    return tuple(params)


if __name__ == "__main__":
    B = 8
    hidden_dim = 32
    out_dim = 1

    key = jax.random.PRNGKey(0)
    ka, kc = jax.random.split(key)
    anchor = jax.random.normal(ka, (B, hidden_dim), jnp.float32)
    cand = jax.random.normal(kc, (B, hidden_dim), jnp.float32)

    params = init_params(hidden_dim, out_dim, seed=0)

    y = mlp_regression_probe(anchor, cand, params)
    jax.block_until_ready(y)

    # Pure-JAX f32 reference check (bf16 matmuls -> looser tolerance).
    w1, b1, w2, b2, w3, b3, w4, b4 = params
    x = jnp.concatenate([anchor, cand], axis=1)
    h = jnp.maximum(x @ w1 + b1, 0.0)
    h = jnp.maximum(h @ w2 + b2, 0.0)
    h = jnp.maximum(h @ w3 + b3, 0.0)
    y_ref = (h @ w4 + b4).squeeze(axis=1)
    assert y.shape == (B,)
    assert jnp.allclose(y, y_ref, atol=2e-2, rtol=2e-2), (
        f"max abs diff {jnp.max(jnp.abs(y - y_ref))}")

    print("KERNEL_OK")
</pallas_src>

<mosaic_0001>
module attributes {stable_mosaic.version = 11 : i64} {
  func.func @_mlp_probe_kernel(%arg0: i32, %arg1: memref<8x64xbf16, #tpu.memory_space<vmem>>, %arg2: memref<64x256xbf16, #tpu.memory_space<vmem>>, %arg3: memref<1x256xf32, #tpu.memory_space<vmem>>, %arg4: memref<256x128xbf16, #tpu.memory_space<vmem>>, %arg5: memref<1x128xf32, #tpu.memory_space<vmem>>, %arg6: memref<128x64xbf16, #tpu.memory_space<vmem>>, %arg7: memref<1x64xf32, #tpu.memory_space<vmem>>, %arg8: memref<1x64xf32, #tpu.memory_space<vmem>>, %arg9: memref<1x1xf32, #tpu.memory_space<vmem>>, %arg10: memref<8x1xf32, #tpu.memory_space<vmem>>) attributes {dimension_semantics = [#tpu.dimension_semantics<parallel>], iteration_bounds = array<i64: 1>, scalar_prefetch = 0 : i64, scratch_operands = 0 : i64, tpu.core_type = #tpu.core_type<tc>, window_params = [{transform_indices = @transform_0, window_bounds = array<i64: 8, 64>}, {pipeline_mode = #tpu.pipeline_mode<synchronous>, transform_indices = @transform_1, window_bounds = array<i64: 64, 256>}, {pipeline_mode = #tpu.pipeline_mode<synchronous>, transform_indices = @transform_2, window_bounds = array<i64: 1, 256>}, {pipeline_mode = #tpu.pipeline_mode<synchronous>, transform_indices = @transform_3, window_bounds = array<i64: 256, 128>}, {pipeline_mode = #tpu.pipeline_mode<synchronous>, transform_indices = @transform_4, window_bounds = array<i64: 1, 128>}, {pipeline_mode = #tpu.pipeline_mode<synchronous>, transform_indices = @transform_5, window_bounds = array<i64: 128, 64>}, {pipeline_mode = #tpu.pipeline_mode<synchronous>, transform_indices = @transform_6, window_bounds = array<i64: 1, 64>}, {pipeline_mode = #tpu.pipeline_mode<synchronous>, transform_indices = @transform_7, window_bounds = array<i64: 1, 64>}, {pipeline_mode = #tpu.pipeline_mode<synchronous>, transform_indices = @transform_8, window_bounds = array<i64: 1, 1>}, {transform_indices = @transform_9, window_bounds = array<i64: 8, 1>}]} {
    %c0 = arith.constant 0 : index
    %c0_0 = arith.constant 0 : index
    %0 = vector.load %arg1[%c0, %c0_0] : memref<8x64xbf16, #tpu.memory_space<vmem>>, vector<8x64xbf16>
    %c0_1 = arith.constant 0 : index
    %c0_2 = arith.constant 0 : index
    %1 = vector.load %arg2[%c0_1, %c0_2] : memref<64x256xbf16, #tpu.memory_space<vmem>>, vector<64x256xbf16>
    %cst = arith.constant dense<0.000000e+00> : vector<8x256xf32>
    %2 = tpu.matmul %0, %1, %cst {dimension_numbers = #tpu.dot_dimension_numbers<[1], [0], [0], [1], [0, 0, 1, 1], [], []>} : vector<8x64xbf16>, vector<64x256xbf16>, vector<8x256xf32> -> vector<8x256xf32>
    %c0_3 = arith.constant 0 : index
    %c0_4 = arith.constant 0 : index
    %3 = vector.load %arg3[%c0_3, %c0_4] : memref<1x256xf32, #tpu.memory_space<vmem>>, vector<1x256xf32>
    %4 = vector.broadcast %3 : vector<1x256xf32> to vector<8x256xf32>
    %5 = arith.addf %2, %4 : vector<8x256xf32>
    %cst_5 = arith.constant 0.000000e+00 : f32
    %6 = vector.broadcast %cst_5 : f32 to vector<8x256xf32>
    %7 = arith.maximumf %5, %6 : vector<8x256xf32>
    %8 = arith.truncf %7 : vector<8x256xf32> to vector<8x256xbf16>
    %c0_6 = arith.constant 0 : index
    %c0_7 = arith.constant 0 : index
    %9 = vector.load %arg4[%c0_6, %c0_7] : memref<256x128xbf16, #tpu.memory_space<vmem>>, vector<256x128xbf16>
    %cst_8 = arith.constant dense<0.000000e+00> : vector<8x128xf32>
    %10 = tpu.matmul %8, %9, %cst_8 {dimension_numbers = #tpu.dot_dimension_numbers<[1], [0], [0], [1], [0, 0, 1, 1], [], []>} : vector<8x256xbf16>, vector<256x128xbf16>, vector<8x128xf32> -> vector<8x128xf32>
    %c0_9 = arith.constant 0 : index
    %c0_10 = arith.constant 0 : index
    %11 = vector.load %arg5[%c0_9, %c0_10] : memref<1x128xf32, #tpu.memory_space<vmem>>, vector<1x128xf32>
    %12 = vector.broadcast %11 : vector<1x128xf32> to vector<8x128xf32>
    %13 = arith.addf %10, %12 : vector<8x128xf32>
    %cst_11 = arith.constant 0.000000e+00 : f32
    %14 = vector.broadcast %cst_11 : f32 to vector<8x128xf32>
    %15 = arith.maximumf %13, %14 : vector<8x128xf32>
    %16 = arith.truncf %15 : vector<8x128xf32> to vector<8x128xbf16>
    %c0_12 = arith.constant 0 : index
    %c0_13 = arith.constant 0 : index
    %17 = vector.load %arg6[%c0_12, %c0_13] : memref<128x64xbf16, #tpu.memory_space<vmem>>, vector<128x64xbf16>
    %cst_14 = arith.constant dense<0.000000e+00> : vector<8x64xf32>
    %18 = tpu.matmul %16, %17, %cst_14 {dimension_numbers = #tpu.dot_dimension_numbers<[1], [0], [0], [1], [0, 0, 1, 1], [], []>} : vector<8x128xbf16>, vector<128x64xbf16>, vector<8x64xf32> -> vector<8x64xf32>
    %c0_15 = arith.constant 0 : index
    %c0_16 = arith.constant 0 : index
    %19 = vector.load %arg7[%c0_15, %c0_16] : memref<1x64xf32, #tpu.memory_space<vmem>>, vector<1x64xf32>
    %20 = vector.broadcast %19 : vector<1x64xf32> to vector<8x64xf32>
    %21 = arith.addf %18, %20 : vector<8x64xf32>
    %cst_17 = arith.constant 0.000000e+00 : f32
    %22 = vector.broadcast %cst_17 : f32 to vector<8x64xf32>
    %23 = arith.maximumf %21, %22 : vector<8x64xf32>
    %c0_18 = arith.constant 0 : index
    %c0_19 = arith.constant 0 : index
    %24 = vector.load %arg8[%c0_18, %c0_19] : memref<1x64xf32, #tpu.memory_space<vmem>>, vector<1x64xf32>
    %25 = vector.broadcast %24 : vector<1x64xf32> to vector<8x64xf32>
    %26 = arith.mulf %23, %25 : vector<8x64xf32>
    %cst_20 = arith.constant dense<0.000000e+00> : vector<8xf32>
    %27 = vector.multi_reduction <add>, %26, %cst_20 [1] : vector<8x64xf32> to vector<8xf32>
    %28 = vector.shape_cast %27 : vector<8xf32> to vector<8x1xf32>
    %c0_21 = arith.constant 0 : index
    %c0_22 = arith.constant 0 : index
    %29 = vector.load %arg9[%c0_21, %c0_22] : memref<1x1xf32, #tpu.memory_space<vmem>>, vector<1x1xf32>
    %30 = vector.broadcast %29 : vector<1x1xf32> to vector<8x1xf32>
    %31 = arith.addf %28, %30 : vector<8x1xf32>
    %c0_23 = arith.constant 0 : index
    %c0_24 = arith.constant 0 : index
    %32 = vector.load %arg10[%c0_23, %c0_24] : memref<8x1xf32, #tpu.memory_space<vmem>>, vector<8x1xf32>
    tpu.vector_store %arg10[%c0_23, %c0_24], %31 {strides = array<i32>} : memref<8x1xf32, #tpu.memory_space<vmem>>, vector<8x1xf32>,
    return
  }
  func.func @transform_0(%arg0: i32) -> (i32, i32) {
    %c0_i32 = arith.constant 0 : i32
    %c0_i32_0 = arith.constant 0 : i32
    return %arg0, %c0_i32 : i32, i32
  }
  func.func @transform_1(%arg0: i32) -> (i32, i32) {
    %c0_i32 = arith.constant 0 : i32
    %c0_i32_0 = arith.constant 0 : i32
    %c0_i32_1 = arith.constant 0 : i32
    return %c0_i32, %c0_i32_0 : i32, i32
  }
  func.func @transform_2(%arg0: i32) -> (i32, i32) {
    %c0_i32 = arith.constant 0 : i32
    %c0_i32_0 = arith.constant 0 : i32
    %c0_i32_1 = arith.constant 0 : i32
    return %c0_i32, %c0_i32_0 : i32, i32
  }
  func.func @transform_3(%arg0: i32) -> (i32, i32) {
    %c0_i32 = arith.constant 0 : i32
    %c0_i32_0 = arith.constant 0 : i32
    %c0_i32_1 = arith.constant 0 : i32
    return %c0_i32, %c0_i32_0 : i32, i32
  }
  func.func @transform_4(%arg0: i32) -> (i32, i32) {
    %c0_i32 = arith.constant 0 : i32
    %c0_i32_0 = arith.constant 0 : i32
    %c0_i32_1 = arith.constant 0 : i32
    return %c0_i32, %c0_i32_0 : i32, i32
  }
  func.func @transform_5(%arg0: i32) -> (i32, i32) {
    %c0_i32 = arith.constant 0 : i32
    %c0_i32_0 = arith.constant 0 : i32
    %c0_i32_1 = arith.constant 0 : i32
    return %c0_i32, %c0_i32_0 : i32, i32
  }
  func.func @transform_6(%arg0: i32) -> (i32, i32) {
    %c0_i32 = arith.constant 0 : i32
    %c0_i32_0 = arith.constant 0 : i32
    %c0_i32_1 = arith.constant 0 : i32
    return %c0_i32, %c0_i32_0 : i32, i32
  }
  func.func @transform_7(%arg0: i32) -> (i32, i32) {
    %c0_i32 = arith.constant 0 : i32
    %c0_i32_0 = arith.constant 0 : i32
    %c0_i32_1 = arith.constant 0 : i32
    return %c0_i32, %c0_i32_0 : i32, i32
  }
  func.func @transform_8(%arg0: i32) -> (i32, i32) {
    %c0_i32 = arith.constant 0 : i32
    %c0_i32_0 = arith.constant 0 : i32
    %c0_i32_1 = arith.constant 0 : i32
    return %c0_i32, %c0_i32_0 : i32, i32
  }
  func.func @transform_9(%arg0: i32) -> (i32, i32) {
    %c0_i32 = arith.constant 0 : i32
    %c0_i32_0 = arith.constant 0 : i32
    return %arg0, %c0_i32 : i32, i32
  }
}

</mosaic_0001>

<llo_original>
// kernel: tpu_custom_call.1
$region0: #{tpu_custom_call.1}
  #allocation0 [shape = 'u32[]', space=smem, size = 0x4, offset = 0x4, fixed_abs, tag = 'smem constant byte address 0x4 - core index']
  #allocation1 [shape = 'u32[72,128]{1,0:T(1,128)}', space=vmem, size = 0x9000, scoped, tag = 'internal scratch']
  #allocation2 [shape = 'f32[1,1]{1,0:T(1,128)S(1)}', space=vmem, size = 0x200, scoped, tag = 'scoped memory for tpu_custom_call.1']
  %s0 = inlined_call_operand.vmem [shape: bf16[8,64], index: 0, kind: input, shape index: {}]
  %s1 = inlined_call_operand.vmem [shape: bf16[64,256], index: 1, kind: input, shape index: {}]
  %s2 = inlined_call_operand.vmem [shape: f32[1,256], index: 2, kind: input, shape index: {}]
  %s3 = inlined_call_operand.hbm [shape: bf16[256,128], index: 3, kind: input, shape index: {}]
  %s4 = inlined_call_operand.vmem [shape: f32[1,128], index: 4, kind: input, shape index: {}]
  %s5 = inlined_call_operand.vmem [shape: bf16[128,64], index: 5, kind: input, shape index: {}]
  %s6 = inlined_call_operand.vmem [shape: f32[1,64], index: 6, kind: input, shape index: {}]
  %s7 = inlined_call_operand.vmem [shape: f32[1,64], index: 7, kind: input, shape index: {}]
  %s8 = inlined_call_operand.<no memory space> [shape: f32[1,1], index: 8, kind: input, shape index: {}]
  %s9 = inlined_call_operand.vmem [shape: f32[8,1], index: 9, kind: output, shape index: {}]
  %s10 = sld [smem:[#allocation0]]
  $region50: #{tpu_custom_call.1} parent=0
    _
  %s12 = ssub.s32 1, %s10
  %s13 = scalar_select 0, %s12, %s10
  %v14 = vstv %s8
  %15 = vst [vmem:[#allocation2] sm:$0x1] %v14
  $region1: #{tpu_custom_call.1} parent=0
    #allocation3 [shape = 'u8[65536]{0}', space=vmem, size = 0x10000, scoped, tag = 'input window, operand 3, single buffered']
    #allocation4 [shape = 's32[1]{0}', space=sflag, size = 0x4, scoped, tag = 'scoped memory for tpu_custom_call.1']
    %16 = vsyncpa [#allocation4], 0
    // Predicated region
    $region2: #{tpu_custom_call.1} parent=1 // pred_check
      _
    $region3: #{tpu_custom_call.1} parent=1 // pred_check_branch
      %18 = sbr.rel (0) target = $region5
    $region4: #{tpu_custom_call.1} parent=1 // pred_region
      _
    $region5: #{tpu_custom_call.1} parent=1 // pred_fallthru
      _
    // Predicated region
    $region6: #{tpu_custom_call.1} parent=1 // pred_check
      _
    $region7: #{tpu_custom_call.1} parent=1 // pred_check_branch
      %20 = sbr.rel (0) target = $region9
    $region8: #{tpu_custom_call.1} parent=1 // pred_region
      _
    $region9: #{tpu_custom_call.1} parent=1 // pred_fallthru
      _
    // Predicated region
    $region10: #{tpu_custom_call.1} parent=1 // pred_check
      _
    $region11: #{tpu_custom_call.1} parent=1 // pred_check_branch
      %22 = sbr.rel (0) target = $region13
    $region12: #{tpu_custom_call.1} parent=1 // pred_region
      _
    $region13: #{tpu_custom_call.1} parent=1 // pred_fallthru
      _
    // Predicated region
    $region14: #{tpu_custom_call.1} parent=1 // pred_check
      _
    $region15: #{tpu_custom_call.1} parent=1 // pred_check_branch
      %24 = sbr.rel (0) target = $region17
    $region16: #{tpu_custom_call.1} parent=1 // pred_region
      %26 = vsyncadd [#allocation4], 0
      %s27 = sshll.u32 %s3, 4
      %s28 = int_to_ptr.hbm [resolvable:$true] %s27
      %s29 = sshll.u32 [#allocation3], 4
      %s30 = int_to_ptr.vmem [resolvable:$true] %s29
      %35 = dma.hbm_to_vmem [thread:$0]  %s28, 2048, %s30, [#allocation4], 64, 64, 4
    $region17: #{tpu_custom_call.1} parent=1 // pred_fallthru
      _
    // Predicated region
    $region18: #{tpu_custom_call.1} parent=1 // pred_check
      _
    $region19: #{tpu_custom_call.1} parent=1 // pred_check_branch
      %37 = sbr.rel (0) target = $region21
    $region20: #{tpu_custom_call.1} parent=1 // pred_region
      _
    $region21: #{tpu_custom_call.1} parent=1 // pred_fallthru
      _
    // Predicated region
    $region22: #{tpu_custom_call.1} parent=1 // pred_check
      _
    $region23: #{tpu_custom_call.1} parent=1 // pred_check_branch
      %39 = sbr.rel (0) target = $region25
    $region24: #{tpu_custom_call.1} parent=1 // pred_region
      _
    $region25: #{tpu_custom_call.1} parent=1 // pred_fallthru
      _
    // Predicated region
    $region26: #{tpu_custom_call.1} parent=1 // pred_check
      _
    $region27: #{tpu_custom_call.1} parent=1 // pred_check_branch
      %41 = sbr.rel (0) target = $region29
    $region28: #{tpu_custom_call.1} parent=1 // pred_region
      _
    $region29: #{tpu_custom_call.1} parent=1 // pred_fallthru
      _
    // Predicated region
    $region30: #{tpu_custom_call.1} parent=1 // pred_check
      _
    $region31: #{tpu_custom_call.1} parent=1 // pred_check_branch
      %43 = sbr.rel (0) target = $region33
    $region32: #{tpu_custom_call.1} parent=1 // pred_region
      _
    $region33: #{tpu_custom_call.1} parent=1 // pred_fallthru
      _
    // Predicated region
    $region34: #{tpu_custom_call.1} parent=1 // pred_check
      _
    $region35: #{tpu_custom_call.1} parent=1 // pred_check_branch
      %45 = sbr.rel (0) target = $region37
    $region36: #{tpu_custom_call.1} parent=1 // pred_region
      _
    $region37: #{tpu_custom_call.1} parent=1 // pred_fallthru
      _
    // Predicated region
    $region38: #{tpu_custom_call.1} parent=1 // pred_check
      _
    $region39: #{tpu_custom_call.1} parent=1 // pred_check_branch
      %47 = sbr.rel (0) target = $region41
    $region40: #{tpu_custom_call.1} parent=1 // pred_region
      %49 = dma.done [#allocation4], 2048
    $region41: #{tpu_custom_call.1} parent=1 // pred_fallthru
      _
    %v51 = vld [vmem:[%s0] sm:$0xf]
    %v52 = vld [vmem:[%s1] sm:$0xff]
    %v53 = vld [vmem:[%s1 + $0x8] sm:$0xff]
    %v54 = vld [vmem:[%s1 + $0x10] sm:$0xff]
    %v55 = vld [vmem:[%s1 + $0x18] sm:$0xff]
    %v56 = vld [vmem:[%s1 + $0x20] sm:$0xff]
    %v57 = vld [vmem:[%s1 + $0x28] sm:$0xff]
    %v58 = vld [vmem:[%s1 + $0x30] sm:$0xff]
    %v59 = vld [vmem:[%s1 + $0x38] sm:$0xff]
    %v60 = vld [vmem:[%s2] sm:$0x3]
    %v62 = vperm.slane %v60, 0
    %v63 = vperm.slane %v60, 1
    %v74 = vunpack.c.l.b16 %v52
    %v75 = vunpack.c.h.b16 %v52
    %v76 = vunpack.c.l.b16 %v53
    %v77 = vunpack.c.h.b16 %v53
    %v78 = vunpack.c.l.b16 %v54
    %v79 = vunpack.c.h.b16 %v54
    %v80 = vunpack.c.l.b16 %v55
    %v81 = vunpack.c.h.b16 %v55
    %v82 = vunpack.c.l.b16 %v56
    %v83 = vunpack.c.h.b16 %v56
    %v84 = vunpack.c.l.b16 %v57
    %v85 = vunpack.c.h.b16 %v57
    %v86 = vunpack.c.l.b16 %v58
    %v87 = vunpack.c.h.b16 %v58
    %v88 = vunpack.c.l.b16 %v59
    %v89 = vunpack.c.h.b16 %v59
    %v90 = vpack.c.b16 %v76, %v74
    %v91 = vpack.c.b16 %v77, %v75
    %v92 = vpack.c.b16 %v80, %v78
    %v93 = vpack.c.b16 %v81, %v79
    %v94 = vpack.c.b16 %v84, %v82
    %v95 = vpack.c.b16 %v85, %v83
    %v96 = vpack.c.b16 %v88, %v86
    %v97 = vpack.c.b16 %v89, %v87
    %vm106 = vcmask 523264
    %v108 = vsel %vm106, %v51, 0
    %110 = vmatpush.bf16.msra.mxu0 0
    %111 = vmatpush.bf16.msra.mxu0 0
    %112 = vmatpush.bf16.msra.mxu0 0
    %113 = vmatpush.bf16.msra.mxu0 0
    %114 = vmatpush.bf16.msra.mxu0 %v96
    %115 = vmatpush.bf16.msra.mxu0 %v94
    %116 = vmatpush.bf16.msra.mxu0 %v92
    %117 = vmatpush.bf16.msra.mxu0 %v90
    %118 = vmatmul.bf16.gmra.mxu0 %v108
    %v119 = vpop.f32.mrf.mxu0
    %v120 = vadd.f32 %v62, %v119
    %v121 = vpop.f32.mrf.mxu0
    %122 = vdwg.mxu0
    %123 = vmatpush.bf16.msra.mxu0 0
    %124 = vmatpush.bf16.msra.mxu0 0
    %125 = vmatpush.bf16.msra.mxu0 0
    %126 = vmatpush.bf16.msra.mxu0 0
    %127 = vmatpush.bf16.msra.mxu0 %v97
    %128 = vmatpush.bf16.msra.mxu0 %v95
    %129 = vmatpush.bf16.msra.mxu0 %v93
    %130 = vmatpush.bf16.msra.mxu0 %v91
    %131 = vmatmul.bf16.gmra.mxu0 %v108
    %v132 = vpop.f32.mrf.mxu0
    %v133 = vadd.f32 %v63, %v132
    %v134 = vpop.f32.mrf.mxu0
    %135 = vdwg.mxu0
    %v136 = vmax.f32 %v120, 0.0
    %v137 = vmax.f32 %v133, 0.0
    %v138 = vpack.c.bf16 %v136, %v136
    %v139 = vpack.c.bf16 %v137, %v137
    %v140 = vld [vmem:[#allocation3] sm:$0xf]
    %v141 = vld [vmem:[#allocation3 + $0x4] sm:$0xf]
    %v142 = vld [vmem:[#allocation3 + $0x8] sm:$0xf]
    %v143 = vld [vmem:[#allocation3 + $0xc] sm:$0xf]
    %v144 = vld [vmem:[#allocation3 + $0x10] sm:$0xf]
    %v145 = vld [vmem:[#allocation3 + $0x14] sm:$0xf]
    %v146 = vld [vmem:[#allocation3 + $0x18] sm:$0xf]
    %v147 = vld [vmem:[#allocation3 + $0x1c] sm:$0xf]
    %v148 = vld [vmem:[#allocation3 + $0x20] sm:$0xf]
    %v149 = vld [vmem:[#allocation3 + $0x24] sm:$0xf]
    %v150 = vld [vmem:[#allocation3 + $0x28] sm:$0xf]
    %v151 = vld [vmem:[#allocation3 + $0x2c] sm:$0xf]
    %v152 = vld [vmem:[#allocation3 + $0x30] sm:$0xf]
    %v153 = vld [vmem:[#allocation3 + $0x34] sm:$0xf]
    %v154 = vld [vmem:[#allocation3 + $0x38] sm:$0xf]
    %v155 = vld [vmem:[#allocation3 + $0x3c] sm:$0xf]
    %v156 = vld [vmem:[#allocation3 + $0x40] sm:$0xf]
    %v157 = vld [vmem:[#allocation3 + $0x44] sm:$0xf]
    %v158 = vld [vmem:[#allocation3 + $0x48] sm:$0xf]
    %v159 = vld [vmem:[#allocation3 + $0x4c] sm:$0xf]
    %v160 = vld [vmem:[#allocation3 + $0x50] sm:$0xf]
    %v161 = vld [vmem:[#allocation3 + $0x54] sm:$0xf]
    %v162 = vld [vmem:[#allocation3 + $0x58] sm:$0xf]
    %v163 = vld [vmem:[#allocation3 + $0x5c] sm:$0xf]
    %v164 = vld [vmem:[#allocation3 + $0x60] sm:$0xf]
    %v165 = vld [vmem:[#allocation3 + $0x64] sm:$0xf]
    %v166 = vld [vmem:[#allocation3 + $0x68] sm:$0xf]
    %v167 = vld [vmem:[#allocation3 + $0x6c] sm:$0xf]
    %v168 = vld [vmem:[#allocation3 + $0x70] sm:$0xf]
    %v169 = vld [vmem:[#allocation3 + $0x74] sm:$0xf]
    %v170 = vld [vmem:[#allocation3 + $0x78] sm:$0xf]
    %v171 = vld [vmem:[#allocation3 + $0x7c] sm:$0xf]
    %v172 = vld [vmem:[%s4] sm:$0x1]
    %v174 = vperm.slane %v172, 0
    %v208 = vunpack.c.l.b16 %v140
    %v209 = vunpack.c.l.b16 %v141
    %v210 = vunpack.c.l.b16 %v142
    %v211 = vunpack.c.l.b16 %v143
    %v212 = vunpack.c.l.b16 %v144
    %v213 = vunpack.c.l.b16 %v145
    %v214 = vunpack.c.l.b16 %v146
    %v215 = vunpack.c.l.b16 %v147
    %v216 = vunpack.c.l.b16 %v148
    %v217 = vunpack.c.l.b16 %v149
    %v218 = vunpack.c.l.b16 %v150
    %v219 = vunpack.c.l.b16 %v151
    %v220 = vunpack.c.l.b16 %v152
    %v221 = vunpack.c.l.b16 %v153
    %v222 = vunpack.c.l.b16 %v154
    %v223 = vunpack.c.l.b16 %v155
    %v224 = vunpack.c.l.b16 %v156
    %v225 = vunpack.c.l.b16 %v157
    %v226 = vunpack.c.l.b16 %v158
    %v227 = vunpack.c.l.b16 %v159
    %v228 = vunpack.c.l.b16 %v160
    %v229 = vunpack.c.l.b16 %v161
    %v230 = vunpack.c.l.b16 %v162
    %v231 = vunpack.c.l.b16 %v163
    %v232 = vunpack.c.l.b16 %v164
    %v233 = vunpack.c.l.b16 %v165
    %v234 = vunpack.c.l.b16 %v166
    %v235 = vunpack.c.l.b16 %v167
    %v236 = vunpack.c.l.b16 %v168
    %v237 = vunpack.c.l.b16 %v169
    %v238 = vunpack.c.l.b16 %v170
    %v239 = vunpack.c.l.b16 %v171
    %v240 = vpack.c.b16 %v209, %v208
    %v241 = vpack.c.b16 %v211, %v210
    %v242 = vpack.c.b16 %v213, %v212
    %v243 = vpack.c.b16 %v215, %v214
    %v244 = vpack.c.b16 %v217, %v216
    %v245 = vpack.c.b16 %v219, %v218
    %v246 = vpack.c.b16 %v221, %v220
    %v247 = vpack.c.b16 %v223, %v222
    %v248 = vpack.c.b16 %v225, %v224
    %v249 = vpack.c.b16 %v227, %v226
    %v250 = vpack.c.b16 %v229, %v228
    %v251 = vpack.c.b16 %v231, %v230
    %v252 = vpack.c.b16 %v233, %v232
    %v253 = vpack.c.b16 %v235, %v234
    %v254 = vpack.c.b16 %v237, %v236
    %v255 = vpack.c.b16 %v239, %v238
    %272 = vmatpush.bf16.msra.mxu0 %v247
    %273 = vmatpush.bf16.msra.mxu0 %v246
    %274 = vmatpush.bf16.msra.mxu0 %v245
    %275 = vmatpush.bf16.msra.mxu0 %v244
    %276 = vmatpush.bf16.msra.mxu0 %v243
    %277 = vmatpush.bf16.msra.mxu0 %v242
    %278 = vmatpush.bf16.msra.mxu0 %v241
    %279 = vmatpush.bf16.msra.mxu0 %v240
    %280 = vmatmul.bf16.gmra.mxu0 %v138
    %v281 = vpop.f32.mrf.mxu0
    %v282 = vadd.f32 %v174, %v281
    %v283 = vpop.f32.mrf.mxu0
    %284 = vdwg.mxu0
    %285 = vmatpush.bf16.msra.mxu0 %v255
    %286 = vmatpush.bf16.msra.mxu0 %v254
    %287 = vmatpush.bf16.msra.mxu0 %v253
    %288 = vmatpush.bf16.msra.mxu0 %v252
    %289 = vmatpush.bf16.msra.mxu0 %v251
    %290 = vmatpush.bf16.msra.mxu0 %v250
    %291 = vmatpush.bf16.msra.mxu0 %v249
    %292 = vmatpush.bf16.msra.mxu0 %v248
    %293 = vmatmul.bf16.gmra.mxu0 %v139
    %v294 = vpop.f32.mrf.mxu0
    %v295 = vadd.f32 %v282, %v294
    %v296 = vpop.f32.mrf.mxu0
    %297 = vdwg.mxu0
    %v298 = vmax.f32 %v295, 0.0
    %v299 = vpack.c.bf16 %v298, %v298
    %v300 = vld [vmem:[%s5] sm:$0xf]
    %v301 = vld [vmem:[%s5 + $0x4] sm:$0xf]
    %v302 = vld [vmem:[%s5 + $0x8] sm:$0xf]
    %v303 = vld [vmem:[%s5 + $0xc] sm:$0xf]
    %v304 = vld [vmem:[%s5 + $0x10] sm:$0xf]
    %v305 = vld [vmem:[%s5 + $0x14] sm:$0xf]
    %v306 = vld [vmem:[%s5 + $0x18] sm:$0xf]
    %v307 = vld [vmem:[%s5 + $0x1c] sm:$0xf]
    %v308 = vld [vmem:[%s5 + $0x20] sm:$0xf]
    %v309 = vld [vmem:[%s5 + $0x24] sm:$0xf]
    %v310 = vld [vmem:[%s5 + $0x28] sm:$0xf]
    %v311 = vld [vmem:[%s5 + $0x2c] sm:$0xf]
    %v312 = vld [vmem:[%s5 + $0x30] sm:$0xf]
    %v313 = vld [vmem:[%s5 + $0x34] sm:$0xf]
    %v314 = vld [vmem:[%s5 + $0x38] sm:$0xf]
    %v315 = vld [vmem:[%s5 + $0x3c] sm:$0xf]
    %v316 = vld [vmem:[%s6] sm:$0x1]
    %v318 = vperm.slane %v316, 0
    %v336 = vunpack.c.l.b16 %v300
    %v337 = vunpack.c.l.b16 %v301
    %v338 = vunpack.c.l.b16 %v302
    %v339 = vunpack.c.l.b16 %v303
    %v340 = vunpack.c.l.b16 %v304
    %v341 = vunpack.c.l.b16 %v305
    %v342 = vunpack.c.l.b16 %v306
    %v343 = vunpack.c.l.b16 %v307
    %v344 = vunpack.c.l.b16 %v308
    %v345 = vunpack.c.l.b16 %v309
    %v346 = vunpack.c.l.b16 %v310
    %v347 = vunpack.c.l.b16 %v311
    %v348 = vunpack.c.l.b16 %v312
    %v349 = vunpack.c.l.b16 %v313
    %v350 = vunpack.c.l.b16 %v314
    %v351 = vunpack.c.l.b16 %v315
    %v352 = vpack.c.b16 %v337, %v336
    %v353 = vpack.c.b16 %v339, %v338
    %v354 = vpack.c.b16 %v341, %v340
    %v355 = vpack.c.b16 %v343, %v342
    %v356 = vpack.c.b16 %v345, %v344
    %v357 = vpack.c.b16 %v347, %v346
    %v358 = vpack.c.b16 %v349, %v348
    %v359 = vpack.c.b16 %v351, %v350
    %368 = vmatpush.bf16.msra.mxu0 %v359
    %369 = vmatpush.bf16.msra.mxu0 %v358
    %370 = vmatpush.bf16.msra.mxu0 %v357
    %371 = vmatpush.bf16.msra.mxu0 %v356
    %372 = vmatpush.bf16.msra.mxu0 %v355
    %373 = vmatpush.bf16.msra.mxu0 %v354
    %374 = vmatpush.bf16.msra.mxu0 %v353
    %375 = vmatpush.bf16.msra.mxu0 %v352
    %376 = vmatmul.bf16.gmra.mxu0 %v299
    %v377 = vpop.f32.mrf.mxu0
    %v378 = vadd.f32 %v318, %v377
    %v379 = vpop.f32.mrf.mxu0
    %380 = vdwg.mxu0
    %v381 = vmax.f32 %v378, 0.0
    %v382 = vld [vmem:[%s7] sm:$0x1]
    %v384 = vperm.slane %v382, 0
    %v386 = vmul.f32 %v381, %v384
    %v387 = vsel %vm106, %v386, 0.0
    %388 = vadd.xlane.f32.xlu0 %v387
    %v389 = vpop.xlane.xlu0 %388
    %v390 = vld [vmem:[#allocation2] sm:$0x1]
    %v392 = vperm.slane %v390, 0
    %v394 = vadd.f32 %v389, %v392
    %vm395 = vcmask 7168
    %396 = vst.msk [vmem:[%s9] sm:$0xff] %vm395, %v394
    // Predicated region
    $region42: #{tpu_custom_call.1} parent=1 // pred_check
      _
    $region43: #{tpu_custom_call.1} parent=1 // pred_check_branch
      %398 = sbr.rel (0) target = $region45
    $region44: #{tpu_custom_call.1} parent=1 // pred_region
      _
    $region45: #{tpu_custom_call.1} parent=1 // pred_fallthru
      _
    // Predicated region
    $region46: #{tpu_custom_call.1} parent=1 // pred_check
      _
    $region47: #{tpu_custom_call.1} parent=1 // pred_check_branch
      %400 = sbr.rel (0) target = $region49
    $region48: #{tpu_custom_call.1} parent=1 // pred_region
      _
    $region49: #{tpu_custom_call.1} parent=1 // pred_fallthru
      _
    %401 = vsyncpa [#allocation4], 1

</llo_original>
